<compile_context>
chip_gen: v7x
topology: tpu7x:2x2x1
jax: 0.10.0
libtpu: 0.0.40
codegen_flags: <defaults>
</compile_context>

<pallas_src>
import math
from functools import partial

import jax
import jax.numpy as jnp
from jax.experimental import pallas as pl
from jax.experimental.pallas import tpu as pltpu


# Contiguous-run threshold (bytes) above which the pure HBM->HBM DMA path is
# used.  ~512 B runs keep the DMA engine near full burst efficiency.
_DMA_MIN_INNER_BYTES = 512

# Tensors at least this large get >= 2 grid steps in the tiled path so the
# copy is actually pipelined (and both v7x TensorCores get work).
_MIN_PIPELINE_BYTES = 1 << 20


def _chunk_bounds(n, chunks):
    """torch.chunk semantics: ceil-sized chunks; last may be smaller/missing."""
    cs = -(-n // chunks)  # ceil(n / chunks)
    starts = list(range(0, n, cs))
    sizes = [min(cs, n - s) for s in starts]
    return starts, sizes


def _vmem_budgets():
    """(tile footprint budget, vmem_limit_bytes) per TPU generation."""
    cap = None
    try:
        cap = getattr(pltpu.get_tpu_info(), "vmem_capacity_bytes", None)
    except Exception:
        cap = None
    if cap is None:
        cap = 64 * 1024 * 1024  # conservative: assume v7x per-TensorCore VMEM
    if cap >= 96 * 1024 * 1024:
        # v5e / v6e: 128 MiB physical -> bigger tiles amortize per-step overhead.
        return 32 * 1024 * 1024, 96 * 1024 * 1024
    # v7x: 64 MiB physical per TensorCore -> stay well inside it.
    return 16 * 1024 * 1024, 48 * 1024 * 1024


def _align_mult(ndim, axis, itemsize):
    """Block-size multiple required when tiling `axis` (dtype-aware)."""
    if axis == ndim - 1:
        return 128
    if axis == ndim - 2:
        return max(1, 32 // itemsize)  # 8 for f32, 16 for bf16, 32 for int8/fp8
    return 1


# ---------------------------------------------------------------------------
# Path 1: pure HBM->HBM DMA, one (possibly strided) async copy per chunk.
# ---------------------------------------------------------------------------
def _split_dma_kernel(x_ref, *rest, dim, starts, sizes):
    n = len(starts)
    out_refs, sem = rest[:n], rest[n]
    copies = []
    for c, (o_ref, st, sz) in enumerate(zip(out_refs, starts, sizes)):
        idx = (slice(None),) * dim + (pl.ds(st, sz),)
        cp = pltpu.make_async_copy(x_ref.at[idx], o_ref, sem.at[c])
        cp.start()
        copies.append(cp)
    for cp in copies:
        cp.wait()


def _tsplit_dma(x, dim, starts, sizes):
    n = len(starts)
    out_shapes = tuple(
        jax.ShapeDtypeStruct(x.shape[:dim] + (sz,) + x.shape[dim + 1:], x.dtype)
        for sz in sizes
    )
    kernel = partial(_split_dma_kernel, dim=dim, starts=starts, sizes=sizes)
    return pl.pallas_call(
        kernel,
        out_shape=out_shapes,
        in_specs=[pl.BlockSpec(memory_space=pl.ANY)],
        out_specs=tuple(pl.BlockSpec(memory_space=pl.ANY) for _ in range(n)),
        scratch_shapes=[pltpu.SemaphoreType.DMA((n,))],
        cost_estimate=pl.CostEstimate(
            flops=0,
            transcendentals=0,
            bytes_accessed=2 * x.size * x.dtype.itemsize,
        ),
    )(x)


# ---------------------------------------------------------------------------
# Path 2: tiled, double-buffered VMEM copy over a non-split axis.
# ---------------------------------------------------------------------------
def _split_slice_kernel(x_ref, *out_refs, dim, starts, sizes):
    ndim = len(x_ref.shape)
    for o_ref, st, sz in zip(out_refs, starts, sizes):
        idx = tuple(
            slice(st, st + sz) if a == dim else slice(None) for a in range(ndim)
        )
        o_ref[...] = x_ref[idx]


def _split_paired_kernel(*refs):
    # First half: per-chunk input tiles; second half: per-chunk output tiles.
    n = len(refs) // 2
    for i_ref, o_ref in zip(refs[:n], refs[n:]):
        o_ref[...] = i_ref[...]


def _plan_grid_axis(shape, dim, itemsize, max_block):
    """Pick (axis, tile) for a non-split grid axis so the input tile fits
    `max_block` bytes.  Returns None if no single axis can satisfy it."""
    ndim = len(shape)
    total = math.prod(shape)
    total_bytes = total * itemsize
    best = None
    for a in range(ndim):
        if a == dim:
            continue
        full = shape[a]
        m = _align_mult(ndim, a, itemsize)
        row = (total // full) * itemsize  # bytes per unit along axis a
        if full * row <= max_block:
            tile = full
        else:
            tile = (max_block // row // m) * m
            if tile <= 0:
                continue  # even the minimum aligned tile blows the budget
            tile = min(tile, full)
        steps = pl.cdiv(full, tile)
        # Large tensors: force >= 2 grid steps so DMA-in/out overlaps compute
        # and (on v7x) both TensorCores get a share of the grid.
        if steps == 1 and total_bytes >= _MIN_PIPELINE_BYTES and full >= 2 * m:
            half = (full // 2) // m * m
            if half >= m:
                tile = half
                steps = pl.cdiv(full, tile)
        score = (steps >= 2, min(steps, 16), full)
        if best is None or score > best[0]:
            best = (score, a, tile)
    if best is None:
        return None
    return best[1], best[2]


def _per_chunk_blocks_ok(shape, dim, starts, sizes, itemsize):
    """True if every chunk can be its own lane/sublane-aligned input block."""
    ndim = len(shape)
    full = shape[dim]
    m = _align_mult(ndim, dim, itemsize)
    for st, sz in zip(starts, sizes):
        if sz == full:
            continue
        if m > 1 and sz % m != 0:
            return False
        if st % sz != 0:
            return False
    return True


def _make_index_map(ndim, g, dim=None, chunk_idx=0):
    def imap(i):
        return tuple(
            i if a == g else (chunk_idx if a == dim else 0) for a in range(ndim)
        )
    return imap


def _tsplit_tiled(x, dim, starts, sizes, max_block, vmem_limit):
    ndim = x.ndim
    itemsize = x.dtype.itemsize
    plan = _plan_grid_axis(x.shape, dim, itemsize, max_block)
    if plan is None:
        # No non-split axis keeps the tile inside VMEM (fat rows): degrade
        # gracefully to the pure HBM->HBM DMA path instead of OOMing.
        return _tsplit_dma(x, dim, starts, sizes)
    g, tile = plan
    grid = (pl.cdiv(x.shape[g], tile),)
    gmap = _make_index_map(ndim, g)

    out_shapes, out_specs = [], []
    for sz in sizes:
        oshape = x.shape[:dim] + (sz,) + x.shape[dim + 1:]
        oblock = tuple(tile if a == g else oshape[a] for a in range(ndim))
        out_shapes.append(jax.ShapeDtypeStruct(oshape, x.dtype))
        out_specs.append(pl.BlockSpec(oblock, gmap))

    if _per_chunk_blocks_ok(x.shape, dim, starts, sizes, itemsize):
        # Lane/sublane-aligned per-chunk input blocks: full-block copies,
        # no cross-lane slicing on load, unmasked stores on write.
        in_specs, args = [], []
        for st, sz in zip(starts, sizes):
            iblock = tuple(
                tile if a == g else (sz if a == dim else x.shape[a])
                for a in range(ndim)
            )
            in_specs.append(
                pl.BlockSpec(iblock, _make_index_map(ndim, g, dim, st // sz))
            )
            args.append(x)
        kernel = _split_paired_kernel
    else:
        # Shared input block (full split dim), statically sliced per chunk.
        iblock = tuple(tile if a == g else x.shape[a] for a in range(ndim))
        in_specs = [pl.BlockSpec(iblock, gmap)]
        args = [x]
        kernel = partial(_split_slice_kernel, dim=dim, starts=starts, sizes=sizes)

    return pl.pallas_call(
        kernel,
        out_shape=tuple(out_shapes),
        grid=grid,
        in_specs=in_specs,
        out_specs=tuple(out_specs),
        compiler_params=pltpu.CompilerParams(
            dimension_semantics=("parallel",),
            vmem_limit_bytes=vmem_limit,
        ),
        cost_estimate=pl.CostEstimate(
            flops=0,
            transcendentals=0,
            bytes_accessed=2 * x.size * itemsize,
        ),
    )(*args)


def tsplit(x, chunks, dim=-1):
    """Pallas equivalent of torch.chunk(x, chunks, dim) — returns a tuple."""
    ndim = x.ndim
    dim = dim % ndim
    starts, sizes = _chunk_bounds(x.shape[dim], chunks)
    itemsize = x.dtype.itemsize
    inner_bytes = math.prod(x.shape[dim + 1:]) * itemsize
    if dim == 0 or inner_bytes >= _DMA_MIN_INNER_BYTES:
        return _tsplit_dma(x, dim, starts, sizes)
    tile_budget, vmem_limit = _vmem_budgets()
    # Footprint per grid step ~= (in tile + sum of out tiles) * 2 (double
    # buffering) == 4 * in_tile_bytes, so the in-tile gets budget/4.
    return _tsplit_tiled(x, dim, starts, sizes, tile_budget // 4, vmem_limit)


if __name__ == "__main__":
    key = jax.random.PRNGKey(0)
    # NCHW input, matching the PyTorch convention.
    x = jax.random.normal(key, (2, 4, 16, 16), dtype=jnp.float32)

    # Case 1: even split along the default dim (-1): tiled slice path.
    outs = jax.block_until_ready(tsplit(x, chunks=4, dim=-1))
    assert len(outs) == 4
    for i, o in enumerate(outs):
        assert o.shape == (2, 4, 16, 4) and o.dtype == x.dtype
        assert jnp.array_equal(o, x[..., i * 4:(i + 1) * 4])

    # Case 2: uneven split (torch.chunk semantics): 16 -> sizes (6, 6, 4).
    outs3 = jax.block_until_ready(tsplit(x, chunks=3, dim=-1))
    assert tuple(o.shape[-1] for o in outs3) == (6, 6, 4)
    for o, (s, e) in zip(outs3, [(0, 6), (6, 12), (12, 16)]):
        assert jnp.array_equal(o, x[..., s:e])

    # Case 3: channel split (dim=1): contiguous run is 1 KiB -> pure strided
    # HBM->HBM DMA path.
    outs_c = jax.block_until_ready(tsplit(x, chunks=2, dim=1))
    assert jnp.array_equal(outs_c[0], x[:, :2])
    assert jnp.array_equal(outs_c[1], x[:, 2:])

    # Case 4: batch split (dim=0): contiguous HBM->HBM DMA path.
    outs_b = jax.block_until_ready(tsplit(x, chunks=2, dim=0))
    assert jnp.array_equal(outs_b[0], x[:1])
    assert jnp.array_equal(outs_b[1], x[1:])

    # Case 5: second-minor split with sublane-aligned chunks -> per-chunk
    # full-block copy path.
    outs_h = jax.block_until_ready(tsplit(x, chunks=2, dim=2))
    assert jnp.array_equal(outs_h[0], x[:, :, :8])
    assert jnp.array_equal(outs_h[1], x[:, :, 8:])

    # Case 6: bf16 tensor large enough to force a multi-step grid (with a
    # partial final block) and 128-wide chunks -> lane-dense per-chunk blocks.
    xb = jax.random.normal(jax.random.PRNGKey(1), (4, 16, 40, 256),
                           dtype=jnp.bfloat16)
    outs_w = jax.block_until_ready(tsplit(xb, chunks=2, dim=-1))
    assert jnp.array_equal(outs_w[0], xb[..., :128])
    assert jnp.array_equal(outs_w[1], xb[..., 128:])

    # Case 7: same tensor, uneven narrow chunks -> shared-input slice kernel
    # with masked (sub-128-lane) stores and a partial final grid block.
    outs_u = jax.block_until_ready(tsplit(xb, chunks=3, dim=-1))
    assert tuple(o.shape[-1] for o in outs_u) == (86, 86, 84)
    for o, (s, e) in zip(outs_u, [(0, 86), (86, 172), (172, 256)]):
        assert jnp.array_equal(o, xb[..., s:e])

    print("KERNEL_OK")
</pallas_src>

<mosaic_0001>
module attributes {stable_mosaic.version = 11 : i64} {
  func.func @_split_slice_kernel(%arg0: i32, %arg1: memref<2x4x16x16xf32, #tpu.memory_space<vmem>>, %arg2: memref<2x4x16x4xf32, #tpu.memory_space<vmem>>, %arg3: memref<2x4x16x4xf32, #tpu.memory_space<vmem>>, %arg4: memref<2x4x16x4xf32, #tpu.memory_space<vmem>>, %arg5: memref<2x4x16x4xf32, #tpu.memory_space<vmem>>) attributes {dimension_semantics = [#tpu.dimension_semantics<parallel>], iteration_bounds = array<i64: 1>, scalar_prefetch = 0 : i64, scratch_operands = 0 : i64, tpu.core_type = #tpu.core_type<tc>, window_params = [{transform_indices = @transform_0, window_bounds = array<i64: 2, 4, 16, 16>}, {transform_indices = @transform_1, window_bounds = array<i64: 2, 4, 16, 4>}, {transform_indices = @transform_2, window_bounds = array<i64: 2, 4, 16, 4>}, {transform_indices = @transform_3, window_bounds = array<i64: 2, 4, 16, 4>}, {transform_indices = @transform_4, window_bounds = array<i64: 2, 4, 16, 4>}]} {
    %c0 = arith.constant 0 : index
    %c0_0 = arith.constant 0 : index
    %c0_1 = arith.constant 0 : index
    %c0_2 = arith.constant 0 : index
    %0 = vector.load %arg1[%c0, %c0_0, %c0_1, %c0_2] : memref<2x4x16x16xf32, #tpu.memory_space<vmem>>, vector<2x4x16x4xf32>
    %c0_3 = arith.constant 0 : index
    %c0_4 = arith.constant 0 : index
    %c0_5 = arith.constant 0 : index
    %c0_6 = arith.constant 0 : index
    %1 = vector.load %arg2[%c0_3, %c0_4, %c0_5, %c0_6] : memref<2x4x16x4xf32, #tpu.memory_space<vmem>>, vector<2x4x16x4xf32>
    tpu.vector_store %arg2[%c0_3, %c0_4, %c0_5, %c0_6], %0 {strides = array<i32>} : memref<2x4x16x4xf32, #tpu.memory_space<vmem>>, vector<2x4x16x4xf32>,
    %c0_7 = arith.constant 0 : index
    %c0_8 = arith.constant 0 : index
    %c0_9 = arith.constant 0 : index
    %c4 = arith.constant 4 : index
    %2 = vector.load %arg1[%c0_7, %c0_8, %c0_9, %c4] : memref<2x4x16x16xf32, #tpu.memory_space<vmem>>, vector<2x4x16x4xf32>
    %c0_10 = arith.constant 0 : index
    %c0_11 = arith.constant 0 : index
    %c0_12 = arith.constant 0 : index
    %c0_13 = arith.constant 0 : index
    %3 = vector.load %arg3[%c0_10, %c0_11, %c0_12, %c0_13] : memref<2x4x16x4xf32, #tpu.memory_space<vmem>>, vector<2x4x16x4xf32>
    tpu.vector_store %arg3[%c0_10, %c0_11, %c0_12, %c0_13], %2 {strides = array<i32>} : memref<2x4x16x4xf32, #tpu.memory_space<vmem>>, vector<2x4x16x4xf32>,
    %c0_14 = arith.constant 0 : index
    %c0_15 = arith.constant 0 : index
    %c0_16 = arith.constant 0 : index
    %c8 = arith.constant 8 : index
    %4 = vector.load %arg1[%c0_14, %c0_15, %c0_16, %c8] : memref<2x4x16x16xf32, #tpu.memory_space<vmem>>, vector<2x4x16x4xf32>
    %c0_17 = arith.constant 0 : index
    %c0_18 = arith.constant 0 : index
    %c0_19 = arith.constant 0 : index
    %c0_20 = arith.constant 0 : index
    %5 = vector.load %arg4[%c0_17, %c0_18, %c0_19, %c0_20] : memref<2x4x16x4xf32, #tpu.memory_space<vmem>>, vector<2x4x16x4xf32>
    tpu.vector_store %arg4[%c0_17, %c0_18, %c0_19, %c0_20], %4 {strides = array<i32>} : memref<2x4x16x4xf32, #tpu.memory_space<vmem>>, vector<2x4x16x4xf32>,
    %c0_21 = arith.constant 0 : index
    %c0_22 = arith.constant 0 : index
    %c0_23 = arith.constant 0 : index
    %c12 = arith.constant 12 : index
    %6 = vector.load %arg1[%c0_21, %c0_22, %c0_23, %c12] : memref<2x4x16x16xf32, #tpu.memory_space<vmem>>, vector<2x4x16x4xf32>
    %c0_24 = arith.constant 0 : index
    %c0_25 = arith.constant 0 : index
    %c0_26 = arith.constant 0 : index
    %c0_27 = arith.constant 0 : index
    %7 = vector.load %arg5[%c0_24, %c0_25, %c0_26, %c0_27] : memref<2x4x16x4xf32, #tpu.memory_space<vmem>>, vector<2x4x16x4xf32>
    tpu.vector_store %arg5[%c0_24, %c0_25, %c0_26, %c0_27], %6 {strides = array<i32>} : memref<2x4x16x4xf32, #tpu.memory_space<vmem>>, vector<2x4x16x4xf32>,
    return
  }
  func.func @transform_0(%arg0: i32) -> (i32, i32, i32, i32) {
    %c0_i32 = arith.constant 0 : i32
    %c0_i32_0 = arith.constant 0 : i32
    %c0_i32_1 = arith.constant 0 : i32
    %c0_i32_2 = arith.constant 0 : i32
    return %c0_i32, %c0_i32_0, %arg0, %c0_i32_1 : i32, i32, i32, i32
  }
  func.func @transform_1(%arg0: i32) -> (i32, i32, i32, i32) {
    %c0_i32 = arith.constant 0 : i32
    %c0_i32_0 = arith.constant 0 : i32
    %c0_i32_1 = arith.constant 0 : i32
    %c0_i32_2 = arith.constant 0 : i32
    return %c0_i32, %c0_i32_0, %arg0, %c0_i32_1 : i32, i32, i32, i32
  }
  func.func @transform_2(%arg0: i32) -> (i32, i32, i32, i32) {
    %c0_i32 = arith.constant 0 : i32
    %c0_i32_0 = arith.constant 0 : i32
    %c0_i32_1 = arith.constant 0 : i32
    %c0_i32_2 = arith.constant 0 : i32
    return %c0_i32, %c0_i32_0, %arg0, %c0_i32_1 : i32, i32, i32, i32
  }
  func.func @transform_3(%arg0: i32) -> (i32, i32, i32, i32) {
    %c0_i32 = arith.constant 0 : i32
    %c0_i32_0 = arith.constant 0 : i32
    %c0_i32_1 = arith.constant 0 : i32
    %c0_i32_2 = arith.constant 0 : i32
    return %c0_i32, %c0_i32_0, %arg0, %c0_i32_1 : i32, i32, i32, i32
  }
  func.func @transform_4(%arg0: i32) -> (i32, i32, i32, i32) {
    %c0_i32 = arith.constant 0 : i32
    %c0_i32_0 = arith.constant 0 : i32
    %c0_i32_1 = arith.constant 0 : i32
    %c0_i32_2 = arith.constant 0 : i32
    return %c0_i32, %c0_i32_0, %arg0, %c0_i32_1 : i32, i32, i32, i32
  }
}

</mosaic_0001>

<llo_original>
// kernel: tpu_custom_call.1
$region0: #{tpu_custom_call.1}
  #allocation0 [shape = 'u32[]', space=smem, size = 0x4, offset = 0x4, fixed_abs, tag = 'smem constant byte address 0x4 - core index']
  #allocation1 [shape = 'u32[144,128]{1,0:T(1,128)}', space=vmem, size = 0x12000, scoped, tag = 'internal scratch']
  %s0 = inlined_call_operand.hbm [shape: f32[2,4,16,16], index: 0, kind: input, shape index: {}]
  %s1 = inlined_call_operand.vmem [shape: f32[2,4,16,4], index: 1, kind: output, shape index: {0}]
  %s2 = inlined_call_operand.vmem [shape: f32[2,4,16,4], index: 2, kind: output, shape index: {1}]
  %s3 = inlined_call_operand.vmem [shape: f32[2,4,16,4], index: 3, kind: output, shape index: {2}]
  %s4 = inlined_call_operand.vmem [shape: f32[2,4,16,4], index: 4, kind: output, shape index: {3}]
  %5 = xla_tuple %s1, %s2, %s3, %s4
  %s6 = sld [smem:[#allocation0]]
  $region42: #{tpu_custom_call.1} parent=0
    _
  %s8 = ssub.s32 1, %s6
  %s9 = scalar_select 0, %s8, %s6
  $region1: #{tpu_custom_call.1} parent=0
    #allocation2 [shape = 'u8[65536]{0}', space=vmem, size = 0x10000, scoped, tag = 'input window, operand 0, single buffered']
    #allocation3 [shape = 's32[1]{0}', space=sflag, size = 0x4, scoped, tag = 'scoped memory for tpu_custom_call.1']
    %10 = vsyncpa [#allocation3], 0
    // Predicated region
    $region2: #{tpu_custom_call.1} parent=1 // pred_check
      _
    $region3: #{tpu_custom_call.1} parent=1 // pred_check_branch
      %12 = sbr.rel (0) target = $region5
    $region4: #{tpu_custom_call.1} parent=1 // pred_region
      %s14 = ssub.s32 2048, 2048
      %15 = vsyncadd [#allocation3], %s14
      %s16 = sshll.u32 [#allocation2], 4
      %s17 = int_to_ptr.vmem [resolvable:$true] %s16
      %22 = dma.hbm_to_vmem [thread:$0]  %s0, 2048, %s17, [#allocation3], 128, 128, 8
    $region5: #{tpu_custom_call.1} parent=1 // pred_fallthru
      _
    // Predicated region
    $region6: #{tpu_custom_call.1} parent=1 // pred_check
      _
    $region7: #{tpu_custom_call.1} parent=1 // pred_check_branch
      %24 = sbr.rel (0) target = $region9
    $region8: #{tpu_custom_call.1} parent=1 // pred_region
      %25 = dma.done [#allocation3], 2048
    $region9: #{tpu_custom_call.1} parent=1 // pred_fallthru
      _
    %v26 = vld [vmem:[#allocation2] sm:$0xff]
    %v27 = vld [vmem:[#allocation2 + $0x8] sm:$0xff]
    %v28 = vld [vmem:[#allocation2 + $0x10] sm:$0xff]
    %v29 = vld [vmem:[#allocation2 + $0x18] sm:$0xff]
    %v30 = vld [vmem:[#allocation2 + $0x20] sm:$0xff]
    %v31 = vld [vmem:[#allocation2 + $0x28] sm:$0xff]
    %v32 = vld [vmem:[#allocation2 + $0x30] sm:$0xff]
    %v33 = vld [vmem:[#allocation2 + $0x38] sm:$0xff]
    %v34 = vld [vmem:[#allocation2 + $0x40] sm:$0xff]
    %v35 = vld [vmem:[#allocation2 + $0x48] sm:$0xff]
    %v36 = vld [vmem:[#allocation2 + $0x50] sm:$0xff]
    %v37 = vld [vmem:[#allocation2 + $0x58] sm:$0xff]
    %v38 = vld [vmem:[#allocation2 + $0x60] sm:$0xff]
    %v39 = vld [vmem:[#allocation2 + $0x68] sm:$0xff]
    %v40 = vld [vmem:[#allocation2 + $0x70] sm:$0xff]
    %v41 = vld [vmem:[#allocation2 + $0x78] sm:$0xff]
    %vm42 = vcmask 31744
    %43 = vst.msk [vmem:[%s1] sm:$0xff] %vm42, %v26
    %44 = vst.msk [vmem:[%s1 + $0x8] sm:$0xff] %vm42, %v27
    %45 = vst.msk [vmem:[%s1 + $0x10] sm:$0xff] %vm42, %v28
    %46 = vst.msk [vmem:[%s1 + $0x18] sm:$0xff] %vm42, %v29
    %47 = vst.msk [vmem:[%s1 + $0x20] sm:$0xff] %vm42, %v30
    %48 = vst.msk [vmem:[%s1 + $0x28] sm:$0xff] %vm42, %v31
    %49 = vst.msk [vmem:[%s1 + $0x30] sm:$0xff] %vm42, %v32
    %50 = vst.msk [vmem:[%s1 + $0x38] sm:$0xff] %vm42, %v33
    %51 = vst.msk [vmem:[%s1 + $0x40] sm:$0xff] %vm42, %v34
    %52 = vst.msk [vmem:[%s1 + $0x48] sm:$0xff] %vm42, %v35
    %53 = vst.msk [vmem:[%s1 + $0x50] sm:$0xff] %vm42, %v36
    %54 = vst.msk [vmem:[%s1 + $0x58] sm:$0xff] %vm42, %v37
    %55 = vst.msk [vmem:[%s1 + $0x60] sm:$0xff] %vm42, %v38
    %56 = vst.msk [vmem:[%s1 + $0x68] sm:$0xff] %vm42, %v39
    %57 = vst.msk [vmem:[%s1 + $0x70] sm:$0xff] %vm42, %v40
    %58 = vst.msk [vmem:[%s1 + $0x78] sm:$0xff] %vm42, %v41
    %v59 = vld [vmem:[#allocation2] sm:$0xff]
    %v60 = vld [vmem:[#allocation2 + $0x8] sm:$0xff]
    %v61 = vld [vmem:[#allocation2 + $0x10] sm:$0xff]
    %v62 = vld [vmem:[#allocation2 + $0x18] sm:$0xff]
    %v63 = vld [vmem:[#allocation2 + $0x20] sm:$0xff]
    %v64 = vld [vmem:[#allocation2 + $0x28] sm:$0xff]
    %v65 = vld [vmem:[#allocation2 + $0x30] sm:$0xff]
    %v66 = vld [vmem:[#allocation2 + $0x38] sm:$0xff]
    %v67 = vld [vmem:[#allocation2 + $0x40] sm:$0xff]
    %v68 = vld [vmem:[#allocation2 + $0x48] sm:$0xff]
    %v69 = vld [vmem:[#allocation2 + $0x50] sm:$0xff]
    %v70 = vld [vmem:[#allocation2 + $0x58] sm:$0xff]
    %v71 = vld [vmem:[#allocation2 + $0x60] sm:$0xff]
    %v72 = vld [vmem:[#allocation2 + $0x68] sm:$0xff]
    %v73 = vld [vmem:[#allocation2 + $0x70] sm:$0xff]
    %v74 = vld [vmem:[#allocation2 + $0x78] sm:$0xff]
    %91 = vrot.lane.b32.xlu0 %v59, 124
    %v92 = vpop.permute.xlu0 %91
    %93 = vrot.lane.b32.xlu0 %v60, 124
    %v94 = vpop.permute.xlu0 %93
    %95 = vrot.lane.b32.xlu0 %v61, 124
    %v96 = vpop.permute.xlu0 %95
    %97 = vrot.lane.b32.xlu0 %v62, 124
    %v98 = vpop.permute.xlu0 %97
    %99 = vrot.lane.b32.xlu0 %v63, 124
    %v100 = vpop.permute.xlu0 %99
    %101 = vrot.lane.b32.xlu0 %v64, 124
    %v102 = vpop.permute.xlu0 %101
    %103 = vrot.lane.b32.xlu0 %v65, 124
    %v104 = vpop.permute.xlu0 %103
    %105 = vrot.lane.b32.xlu0 %v66, 124
    %v106 = vpop.permute.xlu0 %105
    %107 = vrot.lane.b32.xlu0 %v67, 124
    %v108 = vpop.permute.xlu0 %107
    %109 = vrot.lane.b32.xlu0 %v68, 124
    %v110 = vpop.permute.xlu0 %109
    %111 = vrot.lane.b32.xlu0 %v69, 124
    %v112 = vpop.permute.xlu0 %111
    %113 = vrot.lane.b32.xlu0 %v70, 124
    %v114 = vpop.permute.xlu0 %113
    %115 = vrot.lane.b32.xlu0 %v71, 124
    %v116 = vpop.permute.xlu0 %115
    %117 = vrot.lane.b32.xlu0 %v72, 124
    %v118 = vpop.permute.xlu0 %117
    %119 = vrot.lane.b32.xlu0 %v73, 124
    %v120 = vpop.permute.xlu0 %119
    %121 = vrot.lane.b32.xlu0 %v74, 124
    %v122 = vpop.permute.xlu0 %121
    %139 = vst.msk [vmem:[%s2] sm:$0xff] %vm42, %v92
    %140 = vst.msk [vmem:[%s2 + $0x8] sm:$0xff] %vm42, %v94
    %141 = vst.msk [vmem:[%s2 + $0x10] sm:$0xff] %vm42, %v96
    %142 = vst.msk [vmem:[%s2 + $0x18] sm:$0xff] %vm42, %v98
    %143 = vst.msk [vmem:[%s2 + $0x20] sm:$0xff] %vm42, %v100
    %144 = vst.msk [vmem:[%s2 + $0x28] sm:$0xff] %vm42, %v102
    %145 = vst.msk [vmem:[%s2 + $0x30] sm:$0xff] %vm42, %v104
    %146 = vst.msk [vmem:[%s2 + $0x38] sm:$0xff] %vm42, %v106
    %147 = vst.msk [vmem:[%s2 + $0x40] sm:$0xff] %vm42, %v108
    %148 = vst.msk [vmem:[%s2 + $0x48] sm:$0xff] %vm42, %v110
    %149 = vst.msk [vmem:[%s2 + $0x50] sm:$0xff] %vm42, %v112
    %150 = vst.msk [vmem:[%s2 + $0x58] sm:$0xff] %vm42, %v114
    %151 = vst.msk [vmem:[%s2 + $0x60] sm:$0xff] %vm42, %v116
    %152 = vst.msk [vmem:[%s2 + $0x68] sm:$0xff] %vm42, %v118
    %153 = vst.msk [vmem:[%s2 + $0x70] sm:$0xff] %vm42, %v120
    %154 = vst.msk [vmem:[%s2 + $0x78] sm:$0xff] %vm42, %v122
    %v155 = vld [vmem:[#allocation2] sm:$0xff]
    %v156 = vld [vmem:[#allocation2 + $0x8] sm:$0xff]
    %v157 = vld [vmem:[#allocation2 + $0x10] sm:$0xff]
    %v158 = vld [vmem:[#allocation2 + $0x18] sm:$0xff]
    %v159 = vld [vmem:[#allocation2 + $0x20] sm:$0xff]
    %v160 = vld [vmem:[#allocation2 + $0x28] sm:$0xff]
    %v161 = vld [vmem:[#allocation2 + $0x30] sm:$0xff]
    %v162 = vld [vmem:[#allocation2 + $0x38] sm:$0xff]
    %v163 = vld [vmem:[#allocation2 + $0x40] sm:$0xff]
    %v164 = vld [vmem:[#allocation2 + $0x48] sm:$0xff]
    %v165 = vld [vmem:[#allocation2 + $0x50] sm:$0xff]
    %v166 = vld [vmem:[#allocation2 + $0x58] sm:$0xff]
    %v167 = vld [vmem:[#allocation2 + $0x60] sm:$0xff]
    %v168 = vld [vmem:[#allocation2 + $0x68] sm:$0xff]
    %v169 = vld [vmem:[#allocation2 + $0x70] sm:$0xff]
    %v170 = vld [vmem:[#allocation2 + $0x78] sm:$0xff]
    %187 = vrot.lane.b32.xlu0 %v155, 120
    %v188 = vpop.permute.xlu0 %187
    %189 = vrot.lane.b32.xlu0 %v156, 120
    %v190 = vpop.permute.xlu0 %189
    %191 = vrot.lane.b32.xlu0 %v157, 120
    %v192 = vpop.permute.xlu0 %191
    %193 = vrot.lane.b32.xlu0 %v158, 120
    %v194 = vpop.permute.xlu0 %193
    %195 = vrot.lane.b32.xlu0 %v159, 120
    %v196 = vpop.permute.xlu0 %195
    %197 = vrot.lane.b32.xlu0 %v160, 120
    %v198 = vpop.permute.xlu0 %197
    %199 = vrot.lane.b32.xlu0 %v161, 120
    %v200 = vpop.permute.xlu0 %199
    %201 = vrot.lane.b32.xlu0 %v162, 120
    %v202 = vpop.permute.xlu0 %201
    %203 = vrot.lane.b32.xlu0 %v163, 120
    %v204 = vpop.permute.xlu0 %203
    %205 = vrot.lane.b32.xlu0 %v164, 120
    %v206 = vpop.permute.xlu0 %205
    %207 = vrot.lane.b32.xlu0 %v165, 120
    %v208 = vpop.permute.xlu0 %207
    %209 = vrot.lane.b32.xlu0 %v166, 120
    %v210 = vpop.permute.xlu0 %209
    %211 = vrot.lane.b32.xlu0 %v167, 120
    %v212 = vpop.permute.xlu0 %211
    %213 = vrot.lane.b32.xlu0 %v168, 120
    %v214 = vpop.permute.xlu0 %213
    %215 = vrot.lane.b32.xlu0 %v169, 120
    %v216 = vpop.permute.xlu0 %215
    %217 = vrot.lane.b32.xlu0 %v170, 120
    %v218 = vpop.permute.xlu0 %217
    %235 = vst.msk [vmem:[%s3] sm:$0xff] %vm42, %v188
    %236 = vst.msk [vmem:[%s3 + $0x8] sm:$0xff] %vm42, %v190
    %237 = vst.msk [vmem:[%s3 + $0x10] sm:$0xff] %vm42, %v192
    %238 = vst.msk [vmem:[%s3 + $0x18] sm:$0xff] %vm42, %v194
    %239 = vst.msk [vmem:[%s3 + $0x20] sm:$0xff] %vm42, %v196
    %240 = vst.msk [vmem:[%s3 + $0x28] sm:$0xff] %vm42, %v198
    %241 = vst.msk [vmem:[%s3 + $0x30] sm:$0xff] %vm42, %v200
    %242 = vst.msk [vmem:[%s3 + $0x38] sm:$0xff] %vm42, %v202
    %243 = vst.msk [vmem:[%s3 + $0x40] sm:$0xff] %vm42, %v204
    %244 = vst.msk [vmem:[%s3 + $0x48] sm:$0xff] %vm42, %v206
    %245 = vst.msk [vmem:[%s3 + $0x50] sm:$0xff] %vm42, %v208
    %246 = vst.msk [vmem:[%s3 + $0x58] sm:$0xff] %vm42, %v210
    %247 = vst.msk [vmem:[%s3 + $0x60] sm:$0xff] %vm42, %v212
    %248 = vst.msk [vmem:[%s3 + $0x68] sm:$0xff] %vm42, %v214
    %249 = vst.msk [vmem:[%s3 + $0x70] sm:$0xff] %vm42, %v216
    %250 = vst.msk [vmem:[%s3 + $0x78] sm:$0xff] %vm42, %v218
    %v251 = vld [vmem:[#allocation2] sm:$0xff]
    %v252 = vld [vmem:[#allocation2 + $0x8] sm:$0xff]
    %v253 = vld [vmem:[#allocation2 + $0x10] sm:$0xff]
    %v254 = vld [vmem:[#allocation2 + $0x18] sm:$0xff]
    %v255 = vld [vmem:[#allocation2 + $0x20] sm:$0xff]
    %v256 = vld [vmem:[#allocation2 + $0x28] sm:$0xff]
    %v257 = vld [vmem:[#allocation2 + $0x30] sm:$0xff]
    %v258 = vld [vmem:[#allocation2 + $0x38] sm:$0xff]
    %v259 = vld [vmem:[#allocation2 + $0x40] sm:$0xff]
    %v260 = vld [vmem:[#allocation2 + $0x48] sm:$0xff]
    %v261 = vld [vmem:[#allocation2 + $0x50] sm:$0xff]
    %v262 = vld [vmem:[#allocation2 + $0x58] sm:$0xff]
    %v263 = vld [vmem:[#allocation2 + $0x60] sm:$0xff]
    %v264 = vld [vmem:[#allocation2 + $0x68] sm:$0xff]
    %v265 = vld [vmem:[#allocation2 + $0x70] sm:$0xff]
    %v266 = vld [vmem:[#allocation2 + $0x78] sm:$0xff]
    %283 = vrot.lane.b32.xlu0 %v251, 116
    %v284 = vpop.permute.xlu0 %283
    %285 = vrot.lane.b32.xlu0 %v252, 116
    %v286 = vpop.permute.xlu0 %285
    %287 = vrot.lane.b32.xlu0 %v253, 116
    %v288 = vpop.permute.xlu0 %287
    %289 = vrot.lane.b32.xlu0 %v254, 116
    %v290 = vpop.permute.xlu0 %289
    %291 = vrot.lane.b32.xlu0 %v255, 116
    %v292 = vpop.permute.xlu0 %291
    %293 = vrot.lane.b32.xlu0 %v256, 116
    %v294 = vpop.permute.xlu0 %293
    %295 = vrot.lane.b32.xlu0 %v257, 116
    %v296 = vpop.permute.xlu0 %295
    %297 = vrot.lane.b32.xlu0 %v258, 116
    %v298 = vpop.permute.xlu0 %297
    %299 = vrot.lane.b32.xlu0 %v259, 116
    %v300 = vpop.permute.xlu0 %299
    %301 = vrot.lane.b32.xlu0 %v260, 116
    %v302 = vpop.permute.xlu0 %301
    %303 = vrot.lane.b32.xlu0 %v261, 116
    %v304 = vpop.permute.xlu0 %303
    %305 = vrot.lane.b32.xlu0 %v262, 116
    %v306 = vpop.permute.xlu0 %305
    %307 = vrot.lane.b32.xlu0 %v263, 116
    %v308 = vpop.permute.xlu0 %307
    %309 = vrot.lane.b32.xlu0 %v264, 116
    %v310 = vpop.permute.xlu0 %309
    %311 = vrot.lane.b32.xlu0 %v265, 116
    %v312 = vpop.permute.xlu0 %311
    %313 = vrot.lane.b32.xlu0 %v266, 116
    %v314 = vpop.permute.xlu0 %313
    %331 = vst.msk [vmem:[%s4] sm:$0xff] %vm42, %v284
    %332 = vst.msk [vmem:[%s4 + $0x8] sm:$0xff] %vm42, %v286
    %333 = vst.msk [vmem:[%s4 + $0x10] sm:$0xff] %vm42, %v288
    %334 = vst.msk [vmem:[%s4 + $0x18] sm:$0xff] %vm42, %v290
    %335 = vst.msk [vmem:[%s4 + $0x20] sm:$0xff] %vm42, %v292
    %336 = vst.msk [vmem:[%s4 + $0x28] sm:$0xff] %vm42, %v294
    %337 = vst.msk [vmem:[%s4 + $0x30] sm:$0xff] %vm42, %v296
    %338 = vst.msk [vmem:[%s4 + $0x38] sm:$0xff] %vm42, %v298
    %339 = vst.msk [vmem:[%s4 + $0x40] sm:$0xff] %vm42, %v300
    %340 = vst.msk [vmem:[%s4 + $0x48] sm:$0xff] %vm42, %v302
    %341 = vst.msk [vmem:[%s4 + $0x50] sm:$0xff] %vm42, %v304
    %342 = vst.msk [vmem:[%s4 + $0x58] sm:$0xff] %vm42, %v306
    %343 = vst.msk [vmem:[%s4 + $0x60] sm:$0xff] %vm42, %v308
    %344 = vst.msk [vmem:[%s4 + $0x68] sm:$0xff] %vm42, %v310
    %345 = vst.msk [vmem:[%s4 + $0x70] sm:$0xff] %vm42, %v312
    %346 = vst.msk [vmem:[%s4 + $0x78] sm:$0xff] %vm42, %v314
    // Predicated region
    $region10: #{tpu_custom_call.1} parent=1 // pred_check
      _
    $region11: #{tpu_custom_call.1} parent=1 // pred_check_branch
      %348 = sbr.rel (0) target = $region13
    $region12: #{tpu_custom_call.1} parent=1 // pred_region
      _
    $region13: #{tpu_custom_call.1} parent=1 // pred_fallthru
      _
    // Predicated region
    $region14: #{tpu_custom_call.1} parent=1 // pred_check
      _
    $region15: #{tpu_custom_call.1} parent=1 // pred_check_branch
      %350 = sbr.rel (0) target = $region17
    $region16: #{tpu_custom_call.1} parent=1 // pred_region
      _
    $region17: #{tpu_custom_call.1} parent=1 // pred_fallthru
      _
    // Predicated region
    $region18: #{tpu_custom_call.1} parent=1 // pred_check
      _
    $region19: #{tpu_custom_call.1} parent=1 // pred_check_branch
      %352 = sbr.rel (0) target = $region21
    $region20: #{tpu_custom_call.1} parent=1 // pred_region
      _
    $region21: #{tpu_custom_call.1} parent=1 // pred_fallthru
      _
    // Predicated region
    $region22: #{tpu_custom_call.1} parent=1 // pred_check
      _
    $region23: #{tpu_custom_call.1} parent=1 // pred_check_branch
      %354 = sbr.rel (0) target = $region25
    $region24: #{tpu_custom_call.1} parent=1 // pred_region
      _
    $region25: #{tpu_custom_call.1} parent=1 // pred_fallthru
      _
    // Predicated region
    $region26: #{tpu_custom_call.1} parent=1 // pred_check
      _
    $region27: #{tpu_custom_call.1} parent=1 // pred_check_branch
      %356 = sbr.rel (0) target = $region29
    $region28: #{tpu_custom_call.1} parent=1 // pred_region
      _
    $region29: #{tpu_custom_call.1} parent=1 // pred_fallthru
      _
    // Predicated region
    $region30: #{tpu_custom_call.1} parent=1 // pred_check
      _
    $region31: #{tpu_custom_call.1} parent=1 // pred_check_branch
      %358 = sbr.rel (0) target = $region33
    $region32: #{tpu_custom_call.1} parent=1 // pred_region
      _
    $region33: #{tpu_custom_call.1} parent=1 // pred_fallthru
      _
    // Predicated region
    $region34: #{tpu_custom_call.1} parent=1 // pred_check
      _
    $region35: #{tpu_custom_call.1} parent=1 // pred_check_branch
      %360 = sbr.rel (0) target = $region37
    $region36: #{tpu_custom_call.1} parent=1 // pred_region
      _
    $region37: #{tpu_custom_call.1} parent=1 // pred_fallthru
      _
    // Predicated region
    $region38: #{tpu_custom_call.1} parent=1 // pred_check
      _
    $region39: #{tpu_custom_call.1} parent=1 // pred_check_branch
      %362 = sbr.rel (0) target = $region41
    $region40: #{tpu_custom_call.1} parent=1 // pred_region
      _
    $region41: #{tpu_custom_call.1} parent=1 // pred_fallthru
      _
    %363 = vsyncpa [#allocation3], 1

</llo_original>
